<compile_context>
chip_gen: v5e
topology: v5e:2x2
jax: 0.10.0
libtpu: 0.0.40
codegen_flags: <defaults>
</compile_context>

<pallas_src>
import math
import re
from functools import partial

import jax
import jax.numpy as jnp
from jax.experimental import pallas as pl
from jax.experimental.pallas import tpu as pltpu


def _leaky_relu_kernel(slope_ref, x_ref, o_ref):
    # slope_ref: (1, 1) f32 in SMEM; x_ref / o_ref: (block_rows, ncols) VMEM.
    x = x_ref[...]
    slope = slope_ref[0, 0].astype(x.dtype)
    o_ref[...] = jnp.where(x > 0, x, x * slope)


def _round_up(a, b):
    return ((a + b - 1) // b) * b


def _tpu_generation():
    """Best-effort TPU generation from device_kind; defaults to 6."""
    try:
        kind = jax.devices()[0].device_kind.lower()
    except Exception:
        return 6
    m = re.search(r"(\d+)", kind)
    return int(m.group(1)) if m else 6


def _pick_block_rows(rows, ncols, itemsize, gen):
    """Rows per block: generation-aware target bytes, dtype-aware sublane multiple."""
    sub = max(8, 32 // itemsize)            # 8 f32 / 16 bf16 / 32 int8-fp8
    if gen >= 7:
        target = 8 << 20                    # v7x: 3.2 TB/s -> bigger blocks
    elif gen == 6:
        target = 4 << 20
    else:
        target = 2 << 20                    # v5e and older: already ~roofline
    # Row cost in VMEM includes lane padding up to 128.
    padded_row_bytes = _round_up(max(ncols, 1), 128) * itemsize
    cap = max(sub, (target // padded_row_bytes) // sub * sub)
    if rows <= cap:
        # Split into two grid steps only on v7x (2 TensorCores) and only with
        # enough work per half (>= 512 rows) to amortize the per-step cost.
        if gen >= 7 and rows >= 1024:
            half = _round_up(pl.cdiv(rows, 2), sub)
            if half < rows:
                return half
        return rows
    return cap


def _vmem_limit_bytes(gen):
    # 2 buffers x (in + out) blocks + scratch must fit comfortably.
    return (48 << 20) if gen >= 7 else (32 << 20)


@partial(jax.jit, static_argnames=("donate_input",))
def leaky_relu(x, slope, donate_input=False):
    """Pallas LeakyReLU. x: any-shape float array. slope: float (traced, no recompile)."""
    orig_shape = x.shape
    dtype = x.dtype
    if not jnp.issubdtype(dtype, jnp.floating):
        # Integer dtypes would silently truncate slope; the PyTorch op is float-only.
        raise TypeError(f"leaky_relu expects a floating dtype, got {dtype}")
    n = x.size
    if n == 0:
        return x

    LANE = 128
    itemsize = jnp.dtype(dtype).itemsize
    gen = _tpu_generation()

    # Build a 2-D view of x with NO pad and NO slice (reshapes of a contiguous
    # array are free under jit).
    if n % LANE == 0:
        x2d = jnp.reshape(x, (n // LANE, LANE))            # lane-dense fast path
    elif x.ndim >= 2:
        rows0 = math.prod(orig_shape[:-1])
        x2d = jnp.reshape(x, (rows0, orig_shape[-1]))      # original trailing dim = lanes
    else:
        x2d = jnp.reshape(x, (1, n))                       # rank-0/1 tail case

    rows, ncols = x2d.shape
    block_rows = _pick_block_rows(rows, ncols, itemsize, gen)
    grid = (pl.cdiv(rows, block_rows),)                    # ragged last block is masked

    slope_arr = jnp.full((1, 1), slope, dtype=jnp.float32)

    extra_kwargs = {}
    if donate_input:
        # Alias x2d (input index 1; index 0 is the SMEM slope) to the output.
        # Only useful when the caller actually donates x; otherwise XLA copies.
        extra_kwargs["input_output_aliases"] = {1: 0}

    # TODO(synk): profile on v7x; if dimension_semantics=("parallel",) leaves one
    # TensorCore idle, switch this axis to pltpu.CORE_PARALLEL.
    out2d = pl.pallas_call(
        _leaky_relu_kernel,
        out_shape=jax.ShapeDtypeStruct((rows, ncols), dtype),
        grid_spec=pltpu.PrefetchScalarGridSpec(
            num_scalar_prefetch=0,
            grid=grid,
            in_specs=[
                pl.BlockSpec(memory_space=pltpu.MemorySpace.SMEM),   # slope scalar
                pl.BlockSpec((block_rows, ncols), lambda i: (i, 0)),
            ],
            out_specs=pl.BlockSpec((block_rows, ncols), lambda i: (i, 0)),
        ),
        compiler_params=pltpu.CompilerParams(
            dimension_semantics=("parallel",),
            vmem_limit_bytes=_vmem_limit_bytes(gen),
        ),
        **extra_kwargs,
    )(slope_arr, x2d)

    return jnp.reshape(out2d, orig_shape)


if __name__ == "__main__":
    slope = 0.1  # module's __init__(slope); deterministic choice

    # Primary test: NCHW like the PyTorch module; total size is a multiple of 128.
    x = jax.random.normal(jax.random.PRNGKey(0), (2, 4, 16, 16), dtype=jnp.float32)
    y = jax.block_until_ready(leaky_relu(x, slope))
    y_ref = jnp.where(x > 0, x, x * jnp.float32(slope))
    assert y.shape == x.shape and y.dtype == x.dtype
    assert jnp.allclose(y, y_ref, atol=1e-6, rtol=1e-6)

    # Awkward shape (size not a multiple of 128): exercises the no-pad,
    # original-trailing-dim path (no extra HBM round trips).
    x2 = jax.random.normal(jax.random.PRNGKey(1), (1, 3, 20, 45), dtype=jnp.float32)
    y2 = jax.block_until_ready(leaky_relu(x2, slope))
    y2_ref = jnp.where(x2 > 0, x2, x2 * jnp.float32(slope))
    assert y2.shape == x2.shape and y2.dtype == x2.dtype
    assert jnp.allclose(y2, y2_ref, atol=1e-6, rtol=1e-6)

    # bf16 path: exercises the dtype-aware sublane multiple (sub=16).
    x3 = jax.random.normal(jax.random.PRNGKey(2), (2, 4, 16, 16)).astype(jnp.bfloat16)
    y3 = jax.block_until_ready(leaky_relu(x3, slope))
    y3_ref = jnp.where(x3 > 0, x3, x3 * jnp.asarray(slope, jnp.bfloat16))
    assert y3.shape == x3.shape and y3.dtype == x3.dtype
    assert jnp.allclose(y3.astype(jnp.float32), y3_ref.astype(jnp.float32),
                        atol=1e-2, rtol=1e-2)

    print("KERNEL_OK")
</pallas_src>

<mosaic_0001>
module attributes {stable_mosaic.version = 11 : i64} {
  func.func @_leaky_relu_kernel(%arg0: i32, %arg1: memref<1x1xf32, #tpu.memory_space<smem>>, %arg2: memref<16x128xf32, #tpu.memory_space<vmem>>, %arg3: memref<16x128xf32, #tpu.memory_space<vmem>>) attributes {dimension_semantics = [#tpu.dimension_semantics<parallel>], iteration_bounds = array<i64: 1>, scalar_prefetch = 0 : i64, scratch_operands = 0 : i64, tpu.core_type = #tpu.core_type<tc>, window_params = [{transform_indices = @transform_0, window_bounds = array<i64: 1, 1>}, {transform_indices = @transform_1, window_bounds = array<i64: 16, 128>}, {transform_indices = @transform_2, window_bounds = array<i64: 16, 128>}]} {
    %c0 = arith.constant 0 : index
    %c0_0 = arith.constant 0 : index
    %0 = vector.load %arg2[%c0, %c0_0] : memref<16x128xf32, #tpu.memory_space<vmem>>, vector<16x128xf32>
    %c0_1 = arith.constant 0 : index
    %c0_2 = arith.constant 0 : index
    %1 = memref.load %arg1[%c0_1, %c0_2] : memref<1x1xf32, #tpu.memory_space<smem>>
    %cst = arith.constant 0.000000e+00 : f32
    %2 = vector.broadcast %cst : f32 to vector<16x128xf32>
    %3 = arith.cmpf ogt, %0, %2 : vector<16x128xf32>
    %4 = vector.broadcast %1 : f32 to vector<16x128xf32>
    %5 = arith.mulf %0, %4 : vector<16x128xf32>
    %6 = arith.select %3, %0, %5 : vector<16x128xi1>, vector<16x128xf32>
    %c0_3 = arith.constant 0 : index
    %c0_4 = arith.constant 0 : index
    %7 = vector.load %arg3[%c0_3, %c0_4] : memref<16x128xf32, #tpu.memory_space<vmem>>, vector<16x128xf32>
    tpu.vector_store %arg3[%c0_3, %c0_4], %6 {strides = array<i32>} : memref<16x128xf32, #tpu.memory_space<vmem>>, vector<16x128xf32>,
    return
  }
  func.func @transform_0(%arg0: i32) -> (i32, i32) {
    %c0_i32 = arith.constant 0 : i32
    %c0_i32_0 = arith.constant 0 : i32
    %c0_i32_1 = arith.constant 0 : i32
    return %c0_i32, %c0_i32_0 : i32, i32
  }
  func.func @transform_1(%arg0: i32) -> (i32, i32) {
    %c0_i32 = arith.constant 0 : i32
    %c0_i32_0 = arith.constant 0 : i32
    return %arg0, %c0_i32 : i32, i32
  }
  func.func @transform_2(%arg0: i32) -> (i32, i32) {
    %c0_i32 = arith.constant 0 : i32
    %c0_i32_0 = arith.constant 0 : i32
    return %arg0, %c0_i32 : i32, i32
  }
}

</mosaic_0001>

<llo_original>
// kernel: leaky_relu.1
$region0: #{leaky_relu.1}
  #allocation0 [shape = 'u32[]', space=smem, size = 0x4, offset = 0x4, fixed_abs, tag = 'smem constant byte address 0x4 - core index']
  #allocation1 [shape = 'u32[72,128]{1,0:T(1,128)}', space=vmem, size = 0x9000, scoped, tag = 'internal scratch']
  #allocation2 [shape = 'f32[1,1]{1,0:T(1,128)S(6)}', space=smem, size = 0x200, scoped, tag = 'scoped memory for leaky_relu.1']
  %s0 = inlined_call_operand.<no memory space> [shape: f32[1,1], index: 0, kind: input, shape index: {}]
  %s1 = inlined_call_operand.vmem [shape: f32[16,128], index: 1, kind: input, shape index: {}]
  %s2 = inlined_call_operand.vmem [shape: f32[16,128], index: 2, kind: output, shape index: {}]
  %s3 = sld [smem:[#allocation0]]
  $region18: #{leaky_relu.1} parent=0
    _
  %s5 = ssub.s32 1, %s3
  %s6 = scalar_select 0, %s5, %s3
  %7 = sst [smem:[#allocation2]] %s0
  // Predicated region
  $region2: #{leaky_relu.1} parent=0 // pred_check
    _
  $region3: #{leaky_relu.1} parent=0 // pred_check_branch
    %9 = sbr.rel (0) target = $region5
  $region4: #{leaky_relu.1} parent=0 // pred_region
    _
  $region5: #{leaky_relu.1} parent=0 // pred_fallthru
    _
  // Predicated region
  $region6: #{leaky_relu.1} parent=0 // pred_check
    _
  $region7: #{leaky_relu.1} parent=0 // pred_check_branch
    %11 = sbr.rel (0) target = $region9
  $region8: #{leaky_relu.1} parent=0 // pred_region
    _
  $region9: #{leaky_relu.1} parent=0 // pred_fallthru
    _
  %v12 = vld [vmem:[%s1] sm:$0xff]
  %v13 = vld [vmem:[%s1 + $0x8] sm:$0xff]
  %s14 = sld [smem:[#allocation2]]
  %vm15 = vcmp.gt.f32.partialorder %v12, 0.0
  %vm16 = vcmp.gt.f32.partialorder %v13, 0.0
  %v17 = vstv %s14
  %v18 = vmul.f32 %v12, %v17
  %v19 = vmul.f32 %v13, %v17
  %v20 = vsel %vm15, %v12, %v18
  %v21 = vsel %vm16, %v13, %v19
  %22 = vst [vmem:[%s2] sm:$0xff] %v20
  %23 = vst [vmem:[%s2 + $0x8] sm:$0xff] %v21
  // Predicated region
  $region10: #{leaky_relu.1} parent=0 // pred_check
    _
  $region11: #{leaky_relu.1} parent=0 // pred_check_branch
    %25 = sbr.rel (0) target = $region13
  $region12: #{leaky_relu.1} parent=0 // pred_region
    _
  $region13: #{leaky_relu.1} parent=0 // pred_fallthru
    _
  // Predicated region
  $region14: #{leaky_relu.1} parent=0 // pred_check
    _
  $region15: #{leaky_relu.1} parent=0 // pred_check_branch
    %27 = sbr.rel (0) target = $region17
  $region16: #{leaky_relu.1} parent=0 // pred_region
    _
  $region17: #{leaky_relu.1} parent=0 // pred_fallthru
    _

</llo_original>
